<compile_context>
chip_gen: v7x
topology: tpu7x:2x2x1
jax: 0.10.0
libtpu: 0.0.40
codegen_flags: <defaults>
</compile_context>

<pallas_src>
import jax
import jax.numpy as jnp
from jax.experimental import pallas as pl
from jax.experimental.pallas import tpu as pltpu


# -----------------------------------------------------------------------------
# Pallas kernel: full CoevoBlock forward for the whole batch in one step.
# -----------------------------------------------------------------------------
def coevo_kernel(
    joint_ref,    # (B, J, 3)
    vertx_ref,    # (B, V, 3)
    img_ref,      # (32, B*64)  lane-packed image tokens
    p1_ref,       # (8, 64)     rows 0-2: WjT, row 3: bj, rows 4-6: WvT, row 7: bv
    wmid_ref,     # (J+V, C)    stacked [proj_v2j_w ; proj_j2v_w]
    wfin_ref,     # (B*64, B*6) batch-block-diagonal [WjcT | WvcT]
    bfin_ref,     # (J+V, B*6)  combined bias (middle bias folded through wfin + final bias)
    out_ref,      # (J+V, B*6)  combined output
    s_ref,        # scratch: (C, B*64) concat slab
):
    B, J, _ = joint_ref.shape
    V = vertx_ref.shape[1]
    D = p1_ref.shape[1]          # 64
    C = s_ref.shape[0]           # J + V + 32

    p1 = p1_ref[...]             # (8, 64)

    # ---- Stage 1: Linear(3 -> 64) for joints & vertices, as VPU broadcast-FMAs.
    # Results are written straight into the lane-packed concat slab at static offsets.
    for b in range(B):
        jc = joint_ref[b]        # (J, 3)
        vc = vertx_ref[b]        # (V, 3)
        jf = p1[3:4, :]          # bj  (1, 64)
        vf = p1[7:8, :]          # bv  (1, 64)
        for k in range(3):
            jf = jf + jc[:, k:k + 1] * p1[k:k + 1, :]
            vf = vf + vc[:, k:k + 1] * p1[4 + k:5 + k, :]
        s_ref[0:J, b * D:(b + 1) * D] = jf           # rows [0, J)
        s_ref[J:J + V, b * D:(b + 1) * D] = vf       # rows [J, J+V)

    # Image tokens (already lane-packed for all batch elements in the wrapper).
    s_ref[J + V:C, :] = img_ref[...]                 # rows [J+V, C)

    # ---- Stage 2: one full-width MXU pass: (J+V, C) x (C, B*64).
    feat = jnp.dot(wmid_ref[...], s_ref[...], preferred_element_type=jnp.float32)

    # ---- Stage 3: one MXU pass with the batch-block-diagonal feat->coor weight.
    # The middle-projection bias is already folded into bfin in the wrapper.
    out = jnp.dot(feat, wfin_ref[...], preferred_element_type=jnp.float32) + bfin_ref[...]
    out_ref[...] = out

    # ---- Residual adds on the slices that are actually consumed by the wrapper.
    for b in range(B):
        c0 = 6 * b
        out_ref[0:J, c0:c0 + 3] = out[0:J, c0:c0 + 3] + joint_ref[b]
        out_ref[J:J + V, c0 + 3:c0 + 6] = out[J:J + V, c0 + 3:c0 + 6] + vertx_ref[b]


# -----------------------------------------------------------------------------
# Wrapper: parameter packing (glue) + pallas_call + output unpacking (glue).
# -----------------------------------------------------------------------------
def coevo_block(joint, vertx, img_feat, params):
    """joint (B,J,3), vertx (B,V,3), img_feat (B, 32*64), all float32."""
    B, J, _ = joint.shape
    V = vertx.shape[1]
    D = 64
    C = J + V + 32
    assert J % 8 == 0 and V % 8 == 0, "J and V must be multiples of 8 for sublane alignment"

    # Lane-pack image tokens: (B, 32, 64) -> (32, B*64), img_p[c, b*64+d] = img[b, c, d].
    img_p = img_feat.reshape(B, 32, D).transpose(1, 0, 2).reshape(32, B * D)

    # Packed stage-1 parameters (8, 64).
    p1 = jnp.concatenate(
        [
            params["joint_proj_w"].T,                    # (3, 64)
            params["joint_proj_b"].reshape(1, D),        # (1, 64)
            params["vertx_proj_w"].T,                    # (3, 64)
            params["vertx_proj_b"].reshape(1, D),        # (1, 64)
        ],
        axis=0,
    ).astype(jnp.float32)

    # Stacked middle weight / bias.
    w_mid = jnp.concatenate([params["proj_v2j_w"], params["proj_j2v_w"]], axis=0)  # (J+V, C)
    b_mid = jnp.concatenate([params["proj_v2j_b"], params["proj_j2v_b"]], axis=0)  # (J+V,)

    # Final feat->coor weight: both projections side by side, block-diagonal over batch.
    wc6 = jnp.concatenate([params["proj_jc_w"].T, params["proj_vc_w"].T], axis=1)  # (64, 6)
    w_fin = jnp.kron(jnp.eye(B, dtype=jnp.float32), wc6)                            # (B*64, B*6)

    # Combined bias: middle bias pushed through the final weight + final biases, tiled per batch.
    bc6 = jnp.concatenate([params["proj_jc_b"], params["proj_vc_b"]], axis=0)        # (6,)
    colsum = jnp.sum(wc6, axis=0)                                                    # (6,)
    b_fin = b_mid[:, None] * jnp.tile(colsum, B)[None, :] + jnp.tile(bc6, B)[None, :]  # (J+V, B*6)

    out = pl.pallas_call(
        coevo_kernel,
        out_shape=jax.ShapeDtypeStruct((J + V, B * 6), jnp.float32),
        grid=(1,),
        in_specs=[
            pl.BlockSpec((B, J, 3), lambda i: (0, 0, 0)),      # joint
            pl.BlockSpec((B, V, 3), lambda i: (0, 0, 0)),      # vertx
            pl.BlockSpec((32, B * D), lambda i: (0, 0)),       # img (lane-packed)
            pl.BlockSpec((8, D), lambda i: (0, 0)),            # p1
            pl.BlockSpec((J + V, C), lambda i: (0, 0)),        # w_mid
            pl.BlockSpec((B * D, B * 6), lambda i: (0, 0)),    # w_fin
            pl.BlockSpec((J + V, B * 6), lambda i: (0, 0)),    # b_fin
        ],
        out_specs=pl.BlockSpec((J + V, B * 6), lambda i: (0, 0)),
        scratch_shapes=[pltpu.VMEM((C, B * D), jnp.float32)],
        compiler_params=pltpu.CompilerParams(
            dimension_semantics=("arbitrary",),
        ),
    )(joint, vertx, img_p, p1, w_mid, w_fin, b_fin)

    # Unpack combined output: layout plumbing only.
    out3 = out.reshape(J + V, B, 6)
    j_out = jnp.transpose(out3[:J, :, 0:3], (1, 0, 2))   # (B, J, 3)
    v_out = jnp.transpose(out3[J:, :, 3:6], (1, 0, 2))   # (B, V, 3)
    return j_out, v_out


# -----------------------------------------------------------------------------
# Pure-JAX reference (mirrors the PyTorch forward exactly)
# -----------------------------------------------------------------------------
def coevo_block_ref(joint, vertx, img_feat, params):
    jf = jnp.einsum("bjd,od->bjo", joint, params["joint_proj_w"]) + params["joint_proj_b"]
    vf = jnp.einsum("bvd,od->bvo", vertx, params["vertx_proj_w"]) + params["vertx_proj_b"]
    img = img_feat.reshape(-1, 32, 64)
    concat = jnp.concatenate([jf, vf, img], axis=1)            # (B, C, 64)
    concat_t = jnp.swapaxes(concat, 1, 2)                      # (B, 64, C)
    jof = jnp.swapaxes(
        jnp.einsum("bdc,jc->bdj", concat_t, params["proj_v2j_w"]) + params["proj_v2j_b"], 1, 2
    )
    vof = jnp.swapaxes(
        jnp.einsum("bdc,vc->bdv", concat_t, params["proj_j2v_w"]) + params["proj_j2v_b"], 1, 2
    )
    j_out = jnp.einsum("bjd,od->bjo", jof, params["proj_jc_w"]) + params["proj_jc_b"] + joint[:, :, :3]
    v_out = jnp.einsum("bvd,od->bvo", vof, params["proj_vc_w"]) + params["proj_vc_b"] + vertx[:, :, :3]
    return j_out, v_out


# -----------------------------------------------------------------------------
# Main
# -----------------------------------------------------------------------------
if __name__ == "__main__":
    B = 2
    NUM_JOINT = 16
    NUM_VERTX = 80
    C = NUM_JOINT + NUM_VERTX + 32   # 128
    JOINT_DIM = VERTX_DIM = 64

    key = jax.random.PRNGKey(0)
    keys = jax.random.split(key, 16)

    # Deterministic synthetic parameters (nn.Linear shapes: weight (out, in), bias (out,)).
    params = {
        "joint_proj_w": 0.1 * jax.random.normal(keys[0], (JOINT_DIM, 3), jnp.float32),
        "joint_proj_b": 0.1 * jax.random.normal(keys[1], (JOINT_DIM,), jnp.float32),
        "vertx_proj_w": 0.1 * jax.random.normal(keys[2], (VERTX_DIM, 3), jnp.float32),
        "vertx_proj_b": 0.1 * jax.random.normal(keys[3], (VERTX_DIM,), jnp.float32),
        "proj_v2j_w": 0.1 * jax.random.normal(keys[4], (NUM_JOINT, C), jnp.float32),
        "proj_v2j_b": 0.1 * jax.random.normal(keys[5], (NUM_JOINT,), jnp.float32),
        "proj_j2v_w": 0.1 * jax.random.normal(keys[6], (NUM_VERTX, C), jnp.float32),
        "proj_j2v_b": 0.1 * jax.random.normal(keys[7], (NUM_VERTX,), jnp.float32),
        "proj_jc_w": 0.1 * jax.random.normal(keys[8], (3, JOINT_DIM), jnp.float32),
        "proj_jc_b": 0.1 * jax.random.normal(keys[9], (3,), jnp.float32),
        "proj_vc_w": 0.1 * jax.random.normal(keys[10], (3, VERTX_DIM), jnp.float32),
        "proj_vc_b": 0.1 * jax.random.normal(keys[11], (3,), jnp.float32),
    }

    # Deterministic inputs.
    joint = jax.random.normal(keys[12], (B, NUM_JOINT, 3), jnp.float32)
    vertx = jax.random.normal(keys[13], (B, NUM_VERTX, 3), jnp.float32)
    img_feat = jax.random.normal(keys[14], (B, 32 * 64), jnp.float32)

    j_out, v_out = coevo_block(joint, vertx, img_feat, params)
    jax.block_until_ready((j_out, v_out))

    # Verify against pure-JAX reference of the PyTorch forward.
    j_ref, v_ref = coevo_block_ref(joint, vertx, img_feat, params)
    assert j_out.shape == (B, NUM_JOINT, 3) and v_out.shape == (B, NUM_VERTX, 3)
    assert jnp.allclose(j_out, j_ref, atol=1e-4, rtol=1e-4)
    assert jnp.allclose(v_out, v_ref, atol=1e-4, rtol=1e-4)

    print("KERNEL_OK")
</pallas_src>

<mosaic_0001>
module attributes {stable_mosaic.version = 11 : i64} {
  func.func @coevo_kernel(%arg0: i32, %arg1: memref<2x16x3xf32, #tpu.memory_space<vmem>>, %arg2: memref<2x80x3xf32, #tpu.memory_space<vmem>>, %arg3: memref<32x128xf32, #tpu.memory_space<vmem>>, %arg4: memref<8x64xf32, #tpu.memory_space<vmem>>, %arg5: memref<96x128xf32, #tpu.memory_space<vmem>>, %arg6: memref<128x12xf32, #tpu.memory_space<vmem>>, %arg7: memref<96x12xf32, #tpu.memory_space<vmem>>, %arg8: memref<96x12xf32, #tpu.memory_space<vmem>>, %arg9: memref<128x128xf32, #tpu.memory_space<vmem>>) attributes {dimension_semantics = [#tpu.dimension_semantics<arbitrary>], iteration_bounds = array<i64: 1>, scalar_prefetch = 0 : i64, scratch_operands = 1 : i64, tpu.core_type = #tpu.core_type<tc>, window_params = [{pipeline_mode = #tpu.pipeline_mode<synchronous>, transform_indices = @transform_0, window_bounds = array<i64: 2, 16, 3>}, {pipeline_mode = #tpu.pipeline_mode<synchronous>, transform_indices = @transform_1, window_bounds = array<i64: 2, 80, 3>}, {pipeline_mode = #tpu.pipeline_mode<synchronous>, transform_indices = @transform_2, window_bounds = array<i64: 32, 128>}, {pipeline_mode = #tpu.pipeline_mode<synchronous>, transform_indices = @transform_3, window_bounds = array<i64: 8, 64>}, {pipeline_mode = #tpu.pipeline_mode<synchronous>, transform_indices = @transform_4, window_bounds = array<i64: 96, 128>}, {pipeline_mode = #tpu.pipeline_mode<synchronous>, transform_indices = @transform_5, window_bounds = array<i64: 128, 12>}, {pipeline_mode = #tpu.pipeline_mode<synchronous>, transform_indices = @transform_6, window_bounds = array<i64: 96, 12>}, {pipeline_mode = #tpu.pipeline_mode<synchronous>, transform_indices = @transform_7, window_bounds = array<i64: 96, 12>}]} {
    %c0 = arith.constant 0 : index
    %c0_0 = arith.constant 0 : index
    %0 = vector.load %arg4[%c0, %c0_0] : memref<8x64xf32, #tpu.memory_space<vmem>>, vector<8x64xf32>
    %c0_1 = arith.constant 0 : index
    %c0_2 = arith.constant 0 : index
    %c0_3 = arith.constant 0 : index
    %1 = vector.load %arg1[%c0_1, %c0_2, %c0_3] : memref<2x16x3xf32, #tpu.memory_space<vmem>>, vector<1x16x3xf32>
    %2 = vector.shape_cast %1 : vector<1x16x3xf32> to vector<16x3xf32>
    %c0_4 = arith.constant 0 : index
    %c0_5 = arith.constant 0 : index
    %c0_6 = arith.constant 0 : index
    %3 = vector.load %arg2[%c0_4, %c0_5, %c0_6] : memref<2x80x3xf32, #tpu.memory_space<vmem>>, vector<1x80x3xf32>
    %4 = vector.shape_cast %3 : vector<1x80x3xf32> to vector<80x3xf32>
    %5 = vector.extract_strided_slice %0 {offsets = [3, 0], sizes = [1, 64], strides = [1, 1]} : vector<8x64xf32> to vector<1x64xf32>
    %6 = vector.extract_strided_slice %0 {offsets = [7, 0], sizes = [1, 64], strides = [1, 1]} : vector<8x64xf32> to vector<1x64xf32>
    %7 = vector.extract_strided_slice %2 {offsets = [0, 0], sizes = [16, 1], strides = [1, 1]} : vector<16x3xf32> to vector<16x1xf32>
    %8 = vector.extract_strided_slice %0 {offsets = [0, 0], sizes = [1, 64], strides = [1, 1]} : vector<8x64xf32> to vector<1x64xf32>
    %9 = vector.broadcast %7 : vector<16x1xf32> to vector<16x64xf32>
    %10 = vector.broadcast %8 : vector<1x64xf32> to vector<16x64xf32>
    %11 = arith.mulf %9, %10 : vector<16x64xf32>
    %12 = vector.broadcast %5 : vector<1x64xf32> to vector<16x64xf32>
    %13 = arith.addf %12, %11 : vector<16x64xf32>
    %14 = vector.extract_strided_slice %4 {offsets = [0, 0], sizes = [80, 1], strides = [1, 1]} : vector<80x3xf32> to vector<80x1xf32>
    %15 = vector.extract_strided_slice %0 {offsets = [4, 0], sizes = [1, 64], strides = [1, 1]} : vector<8x64xf32> to vector<1x64xf32>
    %16 = vector.broadcast %14 : vector<80x1xf32> to vector<80x64xf32>
    %17 = vector.broadcast %15 : vector<1x64xf32> to vector<80x64xf32>
    %18 = arith.mulf %16, %17 : vector<80x64xf32>
    %19 = vector.broadcast %6 : vector<1x64xf32> to vector<80x64xf32>
    %20 = arith.addf %19, %18 : vector<80x64xf32>
    %21 = vector.extract_strided_slice %2 {offsets = [0, 1], sizes = [16, 1], strides = [1, 1]} : vector<16x3xf32> to vector<16x1xf32>
    %22 = vector.extract_strided_slice %0 {offsets = [1, 0], sizes = [1, 64], strides = [1, 1]} : vector<8x64xf32> to vector<1x64xf32>
    %23 = vector.broadcast %21 : vector<16x1xf32> to vector<16x64xf32>
    %24 = vector.broadcast %22 : vector<1x64xf32> to vector<16x64xf32>
    %25 = arith.mulf %23, %24 : vector<16x64xf32>
    %26 = arith.addf %13, %25 : vector<16x64xf32>
    %27 = vector.extract_strided_slice %4 {offsets = [0, 1], sizes = [80, 1], strides = [1, 1]} : vector<80x3xf32> to vector<80x1xf32>
    %28 = vector.extract_strided_slice %0 {offsets = [5, 0], sizes = [1, 64], strides = [1, 1]} : vector<8x64xf32> to vector<1x64xf32>
    %29 = vector.broadcast %27 : vector<80x1xf32> to vector<80x64xf32>
    %30 = vector.broadcast %28 : vector<1x64xf32> to vector<80x64xf32>
    %31 = arith.mulf %29, %30 : vector<80x64xf32>
    %32 = arith.addf %20, %31 : vector<80x64xf32>
    %33 = vector.extract_strided_slice %2 {offsets = [0, 2], sizes = [16, 1], strides = [1, 1]} : vector<16x3xf32> to vector<16x1xf32>
    %34 = vector.extract_strided_slice %0 {offsets = [2, 0], sizes = [1, 64], strides = [1, 1]} : vector<8x64xf32> to vector<1x64xf32>
    %35 = vector.broadcast %33 : vector<16x1xf32> to vector<16x64xf32>
    %36 = vector.broadcast %34 : vector<1x64xf32> to vector<16x64xf32>
    %37 = arith.mulf %35, %36 : vector<16x64xf32>
    %38 = arith.addf %26, %37 : vector<16x64xf32>
    %39 = vector.extract_strided_slice %4 {offsets = [0, 2], sizes = [80, 1], strides = [1, 1]} : vector<80x3xf32> to vector<80x1xf32>
    %40 = vector.extract_strided_slice %0 {offsets = [6, 0], sizes = [1, 64], strides = [1, 1]} : vector<8x64xf32> to vector<1x64xf32>
    %41 = vector.broadcast %39 : vector<80x1xf32> to vector<80x64xf32>
    %42 = vector.broadcast %40 : vector<1x64xf32> to vector<80x64xf32>
    %43 = arith.mulf %41, %42 : vector<80x64xf32>
    %44 = arith.addf %32, %43 : vector<80x64xf32>
    %c0_7 = arith.constant 0 : index
    %c0_8 = arith.constant 0 : index
    %45 = vector.load %arg9[%c0_7, %c0_8] : memref<128x128xf32, #tpu.memory_space<vmem>>, vector<16x64xf32>
    tpu.vector_store %arg9[%c0_7, %c0_8], %38 {strides = array<i32>} : memref<128x128xf32, #tpu.memory_space<vmem>>, vector<16x64xf32>,
    %c16 = arith.constant 16 : index
    %c0_9 = arith.constant 0 : index
    %46 = vector.load %arg9[%c16, %c0_9] : memref<128x128xf32, #tpu.memory_space<vmem>>, vector<80x64xf32>
    tpu.vector_store %arg9[%c16, %c0_9], %44 {strides = array<i32>} : memref<128x128xf32, #tpu.memory_space<vmem>>, vector<80x64xf32>,
    %c1 = arith.constant 1 : index
    %c0_10 = arith.constant 0 : index
    %c0_11 = arith.constant 0 : index
    %47 = vector.load %arg1[%c1, %c0_10, %c0_11] : memref<2x16x3xf32, #tpu.memory_space<vmem>>, vector<1x16x3xf32>
    %48 = vector.shape_cast %47 : vector<1x16x3xf32> to vector<16x3xf32>
    %c1_12 = arith.constant 1 : index
    %c0_13 = arith.constant 0 : index
    %c0_14 = arith.constant 0 : index
    %49 = vector.load %arg2[%c1_12, %c0_13, %c0_14] : memref<2x80x3xf32, #tpu.memory_space<vmem>>, vector<1x80x3xf32>
    %50 = vector.shape_cast %49 : vector<1x80x3xf32> to vector<80x3xf32>
    %51 = vector.extract_strided_slice %0 {offsets = [3, 0], sizes = [1, 64], strides = [1, 1]} : vector<8x64xf32> to vector<1x64xf32>
    %52 = vector.extract_strided_slice %0 {offsets = [7, 0], sizes = [1, 64], strides = [1, 1]} : vector<8x64xf32> to vector<1x64xf32>
    %53 = vector.extract_strided_slice %48 {offsets = [0, 0], sizes = [16, 1], strides = [1, 1]} : vector<16x3xf32> to vector<16x1xf32>
    %54 = vector.extract_strided_slice %0 {offsets = [0, 0], sizes = [1, 64], strides = [1, 1]} : vector<8x64xf32> to vector<1x64xf32>
    %55 = vector.broadcast %53 : vector<16x1xf32> to vector<16x64xf32>
    %56 = vector.broadcast %54 : vector<1x64xf32> to vector<16x64xf32>
    %57 = arith.mulf %55, %56 : vector<16x64xf32>
    %58 = vector.broadcast %51 : vector<1x64xf32> to vector<16x64xf32>
    %59 = arith.addf %58, %57 : vector<16x64xf32>
    %60 = vector.extract_strided_slice %50 {offsets = [0, 0], sizes = [80, 1], strides = [1, 1]} : vector<80x3xf32> to vector<80x1xf32>
    %61 = vector.extract_strided_slice %0 {offsets = [4, 0], sizes = [1, 64], strides = [1, 1]} : vector<8x64xf32> to vector<1x64xf32>
    %62 = vector.broadcast %60 : vector<80x1xf32> to vector<80x64xf32>
    %63 = vector.broadcast %61 : vector<1x64xf32> to vector<80x64xf32>
    %64 = arith.mulf %62, %63 : vector<80x64xf32>
    %65 = vector.broadcast %52 : vector<1x64xf32> to vector<80x64xf32>
    %66 = arith.addf %65, %64 : vector<80x64xf32>
    %67 = vector.extract_strided_slice %48 {offsets = [0, 1], sizes = [16, 1], strides = [1, 1]} : vector<16x3xf32> to vector<16x1xf32>
    %68 = vector.extract_strided_slice %0 {offsets = [1, 0], sizes = [1, 64], strides = [1, 1]} : vector<8x64xf32> to vector<1x64xf32>
    %69 = vector.broadcast %67 : vector<16x1xf32> to vector<16x64xf32>
    %70 = vector.broadcast %68 : vector<1x64xf32> to vector<16x64xf32>
    %71 = arith.mulf %69, %70 : vector<16x64xf32>
    %72 = arith.addf %59, %71 : vector<16x64xf32>
    %73 = vector.extract_strided_slice %50 {offsets = [0, 1], sizes = [80, 1], strides = [1, 1]} : vector<80x3xf32> to vector<80x1xf32>
    %74 = vector.extract_strided_slice %0 {offsets = [5, 0], sizes = [1, 64], strides = [1, 1]} : vector<8x64xf32> to vector<1x64xf32>
    %75 = vector.broadcast %73 : vector<80x1xf32> to vector<80x64xf32>
    %76 = vector.broadcast %74 : vector<1x64xf32> to vector<80x64xf32>
    %77 = arith.mulf %75, %76 : vector<80x64xf32>
    %78 = arith.addf %66, %77 : vector<80x64xf32>
    %79 = vector.extract_strided_slice %48 {offsets = [0, 2], sizes = [16, 1], strides = [1, 1]} : vector<16x3xf32> to vector<16x1xf32>
    %80 = vector.extract_strided_slice %0 {offsets = [2, 0], sizes = [1, 64], strides = [1, 1]} : vector<8x64xf32> to vector<1x64xf32>
    %81 = vector.broadcast %79 : vector<16x1xf32> to vector<16x64xf32>
    %82 = vector.broadcast %80 : vector<1x64xf32> to vector<16x64xf32>
    %83 = arith.mulf %81, %82 : vector<16x64xf32>
    %84 = arith.addf %72, %83 : vector<16x64xf32>
    %85 = vector.extract_strided_slice %50 {offsets = [0, 2], sizes = [80, 1], strides = [1, 1]} : vector<80x3xf32> to vector<80x1xf32>
    %86 = vector.extract_strided_slice %0 {offsets = [6, 0], sizes = [1, 64], strides = [1, 1]} : vector<8x64xf32> to vector<1x64xf32>
    %87 = vector.broadcast %85 : vector<80x1xf32> to vector<80x64xf32>
    %88 = vector.broadcast %86 : vector<1x64xf32> to vector<80x64xf32>
    %89 = arith.mulf %87, %88 : vector<80x64xf32>
    %90 = arith.addf %78, %89 : vector<80x64xf32>
    %c0_15 = arith.constant 0 : index
    %c64 = arith.constant 64 : index
    %91 = vector.load %arg9[%c0_15, %c64] : memref<128x128xf32, #tpu.memory_space<vmem>>, vector<16x64xf32>
    tpu.vector_store %arg9[%c0_15, %c64], %84 {strides = array<i32>} : memref<128x128xf32, #tpu.memory_space<vmem>>, vector<16x64xf32>,
    %c16_16 = arith.constant 16 : index
    %c64_17 = arith.constant 64 : index
    %92 = vector.load %arg9[%c16_16, %c64_17] : memref<128x128xf32, #tpu.memory_space<vmem>>, vector<80x64xf32>
    tpu.vector_store %arg9[%c16_16, %c64_17], %90 {strides = array<i32>} : memref<128x128xf32, #tpu.memory_space<vmem>>, vector<80x64xf32>,
    %c0_18 = arith.constant 0 : index
    %c0_19 = arith.constant 0 : index
    %93 = vector.load %arg3[%c0_18, %c0_19] : memref<32x128xf32, #tpu.memory_space<vmem>>, vector<32x128xf32>
    %c96 = arith.constant 96 : index
    %c0_20 = arith.constant 0 : index
    %94 = vector.load %arg9[%c96, %c0_20] : memref<128x128xf32, #tpu.memory_space<vmem>>, vector<32x128xf32>
    tpu.vector_store %arg9[%c96, %c0_20], %93 {strides = array<i32>} : memref<128x128xf32, #tpu.memory_space<vmem>>, vector<32x128xf32>,
    %c0_21 = arith.constant 0 : index
    %c0_22 = arith.constant 0 : index
    %95 = vector.load %arg5[%c0_21, %c0_22] : memref<96x128xf32, #tpu.memory_space<vmem>>, vector<96x128xf32>
    %c0_23 = arith.constant 0 : index
    %c0_24 = arith.constant 0 : index
    %96 = vector.load %arg9[%c0_23, %c0_24] : memref<128x128xf32, #tpu.memory_space<vmem>>, vector<128x128xf32>
    %cst = arith.constant dense<0.000000e+00> : vector<96x128xf32>
    %97 = tpu.matmul %95, %96, %cst {dimension_numbers = #tpu.dot_dimension_numbers<[1], [0], [0], [1], [0, 0, 1, 1], [], []>} : vector<96x128xf32>, vector<128x128xf32>, vector<96x128xf32> -> vector<96x128xf32>
    %c0_25 = arith.constant 0 : index
    %c0_26 = arith.constant 0 : index
    %98 = vector.load %arg6[%c0_25, %c0_26] : memref<128x12xf32, #tpu.memory_space<vmem>>, vector<128x12xf32>
    %cst_27 = arith.constant dense<0.000000e+00> : vector<96x12xf32>
    %99 = tpu.matmul %97, %98, %cst_27 {dimension_numbers = #tpu.dot_dimension_numbers<[1], [0], [0], [1], [0, 0, 1, 1], [], []>} : vector<96x128xf32>, vector<128x12xf32>, vector<96x12xf32> -> vector<96x12xf32>
    %c0_28 = arith.constant 0 : index
    %c0_29 = arith.constant 0 : index
    %100 = vector.load %arg7[%c0_28, %c0_29] : memref<96x12xf32, #tpu.memory_space<vmem>>, vector<96x12xf32>
    %101 = arith.addf %99, %100 : vector<96x12xf32>
    %c0_30 = arith.constant 0 : index
    %c0_31 = arith.constant 0 : index
    %102 = vector.load %arg8[%c0_30, %c0_31] : memref<96x12xf32, #tpu.memory_space<vmem>>, vector<96x12xf32>
    tpu.vector_store %arg8[%c0_30, %c0_31], %101 {strides = array<i32>} : memref<96x12xf32, #tpu.memory_space<vmem>>, vector<96x12xf32>,
    %103 = vector.extract_strided_slice %101 {offsets = [0, 0], sizes = [16, 3], strides = [1, 1]} : vector<96x12xf32> to vector<16x3xf32>
    %c0_32 = arith.constant 0 : index
    %c0_33 = arith.constant 0 : index
    %c0_34 = arith.constant 0 : index
    %104 = vector.load %arg1[%c0_32, %c0_33, %c0_34] : memref<2x16x3xf32, #tpu.memory_space<vmem>>, vector<1x16x3xf32>
    %105 = vector.shape_cast %104 : vector<1x16x3xf32> to vector<16x3xf32>
    %106 = arith.addf %103, %105 : vector<16x3xf32>
    %c0_35 = arith.constant 0 : index
    %c0_36 = arith.constant 0 : index
    %107 = vector.load %arg8[%c0_35, %c0_36] : memref<96x12xf32, #tpu.memory_space<vmem>>, vector<16x3xf32>
    tpu.vector_store %arg8[%c0_35, %c0_36], %106 {strides = array<i32>} : memref<96x12xf32, #tpu.memory_space<vmem>>, vector<16x3xf32>,
    %108 = vector.extract_strided_slice %101 {offsets = [16, 3], sizes = [80, 3], strides = [1, 1]} : vector<96x12xf32> to vector<80x3xf32>
    %c0_37 = arith.constant 0 : index
    %c0_38 = arith.constant 0 : index
    %c0_39 = arith.constant 0 : index
    %109 = vector.load %arg2[%c0_37, %c0_38, %c0_39] : memref<2x80x3xf32, #tpu.memory_space<vmem>>, vector<1x80x3xf32>
    %110 = vector.shape_cast %109 : vector<1x80x3xf32> to vector<80x3xf32>
    %111 = arith.addf %108, %110 : vector<80x3xf32>
    %c16_40 = arith.constant 16 : index
    %c3 = arith.constant 3 : index
    %112 = vector.load %arg8[%c16_40, %c3] : memref<96x12xf32, #tpu.memory_space<vmem>>, vector<80x3xf32>
    tpu.vector_store %arg8[%c16_40, %c3], %111 {strides = array<i32>} : memref<96x12xf32, #tpu.memory_space<vmem>>, vector<80x3xf32>,
    %113 = vector.extract_strided_slice %101 {offsets = [0, 6], sizes = [16, 3], strides = [1, 1]} : vector<96x12xf32> to vector<16x3xf32>
    %c1_41 = arith.constant 1 : index
    %c0_42 = arith.constant 0 : index
    %c0_43 = arith.constant 0 : index
    %114 = vector.load %arg1[%c1_41, %c0_42, %c0_43] : memref<2x16x3xf32, #tpu.memory_space<vmem>>, vector<1x16x3xf32>
    %115 = vector.shape_cast %114 : vector<1x16x3xf32> to vector<16x3xf32>
    %116 = arith.addf %113, %115 : vector<16x3xf32>
    %c0_44 = arith.constant 0 : index
    %c6 = arith.constant 6 : index
    %117 = vector.load %arg8[%c0_44, %c6] : memref<96x12xf32, #tpu.memory_space<vmem>>, vector<16x3xf32>
    tpu.vector_store %arg8[%c0_44, %c6], %116 {strides = array<i32>} : memref<96x12xf32, #tpu.memory_space<vmem>>, vector<16x3xf32>,
    %118 = vector.extract_strided_slice %101 {offsets = [16, 9], sizes = [80, 3], strides = [1, 1]} : vector<96x12xf32> to vector<80x3xf32>
    %c1_45 = arith.constant 1 : index
    %c0_46 = arith.constant 0 : index
    %c0_47 = arith.constant 0 : index
    %119 = vector.load %arg2[%c1_45, %c0_46, %c0_47] : memref<2x80x3xf32, #tpu.memory_space<vmem>>, vector<1x80x3xf32>
    %120 = vector.shape_cast %119 : vector<1x80x3xf32> to vector<80x3xf32>
    %121 = arith.addf %118, %120 : vector<80x3xf32>
    %c16_48 = arith.constant 16 : index
    %c9 = arith.constant 9 : index
    %122 = vector.load %arg8[%c16_48, %c9] : memref<96x12xf32, #tpu.memory_space<vmem>>, vector<80x3xf32>
    tpu.vector_store %arg8[%c16_48, %c9], %121 {strides = array<i32>} : memref<96x12xf32, #tpu.memory_space<vmem>>, vector<80x3xf32>,
    return
  }
  func.func @transform_0(%arg0: i32) -> (i32, i32, i32) {
    %c0_i32 = arith.constant 0 : i32
    %c0_i32_0 = arith.constant 0 : i32
    %c0_i32_1 = arith.constant 0 : i32
    %c0_i32_2 = arith.constant 0 : i32
    return %c0_i32, %c0_i32_0, %c0_i32_1 : i32, i32, i32
  }
  func.func @transform_1(%arg0: i32) -> (i32, i32, i32) {
    %c0_i32 = arith.constant 0 : i32
    %c0_i32_0 = arith.constant 0 : i32
    %c0_i32_1 = arith.constant 0 : i32
    %c0_i32_2 = arith.constant 0 : i32
    return %c0_i32, %c0_i32_0, %c0_i32_1 : i32, i32, i32
  }
  func.func @transform_2(%arg0: i32) -> (i32, i32) {
    %c0_i32 = arith.constant 0 : i32
    %c0_i32_0 = arith.constant 0 : i32
    %c0_i32_1 = arith.constant 0 : i32
    return %c0_i32, %c0_i32_0 : i32, i32
  }
  func.func @transform_3(%arg0: i32) -> (i32, i32) {
    %c0_i32 = arith.constant 0 : i32
    %c0_i32_0 = arith.constant 0 : i32
    %c0_i32_1 = arith.constant 0 : i32
    return %c0_i32, %c0_i32_0 : i32, i32
  }
  func.func @transform_4(%arg0: i32) -> (i32, i32) {
    %c0_i32 = arith.constant 0 : i32
    %c0_i32_0 = arith.constant 0 : i32
    %c0_i32_1 = arith.constant 0 : i32
    return %c0_i32, %c0_i32_0 : i32, i32
  }
  func.func @transform_5(%arg0: i32) -> (i32, i32) {
    %c0_i32 = arith.constant 0 : i32
    %c0_i32_0 = arith.constant 0 : i32
    %c0_i32_1 = arith.constant 0 : i32
    return %c0_i32, %c0_i32_0 : i32, i32
  }
  func.func @transform_6(%arg0: i32) -> (i32, i32) {
    %c0_i32 = arith.constant 0 : i32
    %c0_i32_0 = arith.constant 0 : i32
    %c0_i32_1 = arith.constant 0 : i32
    return %c0_i32, %c0_i32_0 : i32, i32
  }
  func.func @transform_7(%arg0: i32) -> (i32, i32) {
    %c0_i32 = arith.constant 0 : i32
    %c0_i32_0 = arith.constant 0 : i32
    %c0_i32_1 = arith.constant 0 : i32
    return %c0_i32, %c0_i32_0 : i32, i32
  }
}

</mosaic_0001>

<llo_original>
// kernel: tpu_custom_call.1
$region0: #{tpu_custom_call.1}
  #allocation0 [shape = 'u32[]', space=smem, size = 0x4, offset = 0x4, fixed_abs, tag = 'smem constant byte address 0x4 - core index']
  #allocation1 [shape = 'u32[144,128]{1,0:T(1,128)}', space=vmem, size = 0x12000, scoped, tag = 'internal scratch']
  #allocation2 [shape = 'f32[128,128]{1,0:T(8,128)}', space=vmem, size = 0x10000, scoped, tag = 'scratch operand']
  %s0 = inlined_call_operand.vmem [shape: f32[2,16,3], index: 0, kind: input, shape index: {}]
  %s1 = inlined_call_operand.vmem [shape: f32[2,80,3], index: 1, kind: input, shape index: {}]
  %s2 = inlined_call_operand.vmem [shape: f32[32,128], index: 2, kind: input, shape index: {}]
  %s3 = inlined_call_operand.vmem [shape: f32[8,64], index: 3, kind: input, shape index: {}]
  %s4 = inlined_call_operand.vmem [shape: f32[96,128], index: 4, kind: input, shape index: {}]
  %s5 = inlined_call_operand.vmem [shape: f32[128,12], index: 5, kind: input, shape index: {}]
  %s6 = inlined_call_operand.vmem [shape: f32[96,12], index: 6, kind: input, shape index: {}]
  %s7 = inlined_call_operand.vmem [shape: f32[96,12], index: 7, kind: output, shape index: {}]
  %s8 = sld [smem:[#allocation0]]
  $region38: #{tpu_custom_call.1} parent=0
    _
  %s10 = ssub.s32 1, %s8
  %s11 = scalar_select 0, %s10, %s8
  // Predicated region
  $region2: #{tpu_custom_call.1} parent=0 // pred_check
    _
  $region3: #{tpu_custom_call.1} parent=0 // pred_check_branch
    %13 = sbr.rel (0) target = $region5
  $region4: #{tpu_custom_call.1} parent=0 // pred_region
    _
  $region5: #{tpu_custom_call.1} parent=0 // pred_fallthru
    _
  // Predicated region
  $region6: #{tpu_custom_call.1} parent=0 // pred_check
    _
  $region7: #{tpu_custom_call.1} parent=0 // pred_check_branch
    %15 = sbr.rel (0) target = $region9
  $region8: #{tpu_custom_call.1} parent=0 // pred_region
    _
  $region9: #{tpu_custom_call.1} parent=0 // pred_fallthru
    _
  // Predicated region
  $region10: #{tpu_custom_call.1} parent=0 // pred_check
    _
  $region11: #{tpu_custom_call.1} parent=0 // pred_check_branch
    %17 = sbr.rel (0) target = $region13
  $region12: #{tpu_custom_call.1} parent=0 // pred_region
    _
  $region13: #{tpu_custom_call.1} parent=0 // pred_fallthru
    _
  // Predicated region
  $region14: #{tpu_custom_call.1} parent=0 // pred_check
    _
  $region15: #{tpu_custom_call.1} parent=0 // pred_check_branch
    %19 = sbr.rel (0) target = $region17
  $region16: #{tpu_custom_call.1} parent=0 // pred_region
    _
  $region17: #{tpu_custom_call.1} parent=0 // pred_fallthru
    _
  // Predicated region
  $region18: #{tpu_custom_call.1} parent=0 // pred_check
    _
  $region19: #{tpu_custom_call.1} parent=0 // pred_check_branch
    %21 = sbr.rel (0) target = $region21
  $region20: #{tpu_custom_call.1} parent=0 // pred_region
    _
  $region21: #{tpu_custom_call.1} parent=0 // pred_fallthru
    _
  // Predicated region
  $region22: #{tpu_custom_call.1} parent=0 // pred_check
    _
  $region23: #{tpu_custom_call.1} parent=0 // pred_check_branch
    %23 = sbr.rel (0) target = $region25
  $region24: #{tpu_custom_call.1} parent=0 // pred_region
    _
  $region25: #{tpu_custom_call.1} parent=0 // pred_fallthru
    _
  // Predicated region
  $region26: #{tpu_custom_call.1} parent=0 // pred_check
    _
  $region27: #{tpu_custom_call.1} parent=0 // pred_check_branch
    %25 = sbr.rel (0) target = $region29
  $region28: #{tpu_custom_call.1} parent=0 // pred_region
    _
  $region29: #{tpu_custom_call.1} parent=0 // pred_fallthru
    _
  %v26 = vld [vmem:[%s3] sm:$0xff]
  %v27 = vld [vmem:[%s0] sm:$0xff]
  %v28 = vld [vmem:[%s0 + $0x8] sm:$0xff]
  %v29 = vld [vmem:[%s1] sm:$0xff]
  %v30 = vld [vmem:[%s1 + $0x8] sm:$0xff]
  %v31 = vld [vmem:[%s1 + $0x10] sm:$0xff]
  %v32 = vld [vmem:[%s1 + $0x18] sm:$0xff]
  %v33 = vld [vmem:[%s1 + $0x20] sm:$0xff]
  %v34 = vld [vmem:[%s1 + $0x28] sm:$0xff]
  %v35 = vld [vmem:[%s1 + $0x30] sm:$0xff]
  %v36 = vld [vmem:[%s1 + $0x38] sm:$0xff]
  %v37 = vld [vmem:[%s1 + $0x40] sm:$0xff]
  %v38 = vld [vmem:[%s1 + $0x48] sm:$0xff]
  %40 = vset.pattern.permute.xlu0 0
  %41 = vperm.xlu0 %40, %v27
  %v42 = vpop.permute.xlu0 %41
  %45 = vset.pattern.permute.xlu0 0
  %46 = vperm.xlu0 %45, %v28
  %v47 = vpop.permute.xlu0 %46
  %v49 = vlaneseq
  %v50 = vshrl.u32 %v49, 7
  %v51 = vsub.s32 0, %v50
  %v52 = vrot.slane %v26, %v51
  %v53 = vmul.f32 %v42, %v52
  %v54 = vmul.f32 %v47, %v52
  %v55 = vlaneseq
  %v56 = vshrl.u32 %v55, 7
  %v57 = vsub.s32 3, %v56
  %v58 = vrot.slane %v26, %v57
  %v59 = vadd.f32 %v58, %v53
  %v60 = vadd.f32 %v58, %v54
  %62 = vset.pattern.permute.xlu0 0
  %63 = vperm.xlu0 %62, %v29
  %v64 = vpop.permute.xlu0 %63
  %67 = vset.pattern.permute.xlu0 0
  %68 = vperm.xlu0 %67, %v30
  %v69 = vpop.permute.xlu0 %68
  %72 = vset.pattern.permute.xlu0 0
  %73 = vperm.xlu0 %72, %v31
  %v74 = vpop.permute.xlu0 %73
  %77 = vset.pattern.permute.xlu0 0
  %78 = vperm.xlu0 %77, %v32
  %v79 = vpop.permute.xlu0 %78
  %82 = vset.pattern.permute.xlu0 0
  %83 = vperm.xlu0 %82, %v33
  %v84 = vpop.permute.xlu0 %83
  %87 = vset.pattern.permute.xlu0 0
  %88 = vperm.xlu0 %87, %v34
  %v89 = vpop.permute.xlu0 %88
  %92 = vset.pattern.permute.xlu0 0
  %93 = vperm.xlu0 %92, %v35
  %v94 = vpop.permute.xlu0 %93
  %97 = vset.pattern.permute.xlu0 0
  %98 = vperm.xlu0 %97, %v36
  %v99 = vpop.permute.xlu0 %98
  %102 = vset.pattern.permute.xlu0 0
  %103 = vperm.xlu0 %102, %v37
  %v104 = vpop.permute.xlu0 %103
  %107 = vset.pattern.permute.xlu0 0
  %108 = vperm.xlu0 %107, %v38
  %v109 = vpop.permute.xlu0 %108
  %v111 = vlaneseq
  %v112 = vshrl.u32 %v111, 7
  %v113 = vsub.s32 4, %v112
  %v114 = vrot.slane %v26, %v113
  %v115 = vmul.f32 %v64, %v114
  %v116 = vmul.f32 %v69, %v114
  %v117 = vmul.f32 %v74, %v114
  %v118 = vmul.f32 %v79, %v114
  %v119 = vmul.f32 %v84, %v114
  %v120 = vmul.f32 %v89, %v114
  %v121 = vmul.f32 %v94, %v114
  %v122 = vmul.f32 %v99, %v114
  %v123 = vmul.f32 %v104, %v114
  %v124 = vmul.f32 %v109, %v114
  %v125 = vlaneseq
  %v126 = vshrl.u32 %v125, 7
  %v127 = vsub.s32 7, %v126
  %v128 = vrot.slane %v26, %v127
  %v129 = vadd.f32 %v128, %v115
  %v130 = vadd.f32 %v128, %v116
  %v131 = vadd.f32 %v128, %v117
  %v132 = vadd.f32 %v128, %v118
  %v133 = vadd.f32 %v128, %v119
  %v134 = vadd.f32 %v128, %v120
  %v135 = vadd.f32 %v128, %v121
  %v136 = vadd.f32 %v128, %v122
  %v137 = vadd.f32 %v128, %v123
  %v138 = vadd.f32 %v128, %v124
  %139 = vset.pattern.permute.xlu0 1
  %140 = vperm.xlu0 %139, %v27
  %v141 = vpop.permute.xlu0 %140
  %143 = vset.pattern.permute.xlu0 1
  %144 = vperm.xlu0 %143, %v28
  %v145 = vpop.permute.xlu0 %144
  %v147 = vlaneseq
  %v148 = vshrl.u32 %v147, 7
  %v149 = vsub.s32 1, %v148
  %v150 = vrot.slane %v26, %v149
  %v151 = vmul.f32 %v141, %v150
  %v152 = vmul.f32 %v145, %v150
  %v153 = vadd.f32 %v59, %v151
  %v154 = vadd.f32 %v60, %v152
  %155 = vset.pattern.permute.xlu0 1
  %156 = vperm.xlu0 %155, %v29
  %v157 = vpop.permute.xlu0 %156
  %159 = vset.pattern.permute.xlu0 1
  %160 = vperm.xlu0 %159, %v30
  %v161 = vpop.permute.xlu0 %160
  %163 = vset.pattern.permute.xlu0 1
  %164 = vperm.xlu0 %163, %v31
  %v165 = vpop.permute.xlu0 %164
  %167 = vset.pattern.permute.xlu0 1
  %168 = vperm.xlu0 %167, %v32
  %v169 = vpop.permute.xlu0 %168
  %171 = vset.pattern.permute.xlu0 1
  %172 = vperm.xlu0 %171, %v33
  %v173 = vpop.permute.xlu0 %172
  %175 = vset.pattern.permute.xlu0 1
  %176 = vperm.xlu0 %175, %v34
  %v177 = vpop.permute.xlu0 %176
  %179 = vset.pattern.permute.xlu0 1
  %180 = vperm.xlu0 %179, %v35
  %v181 = vpop.permute.xlu0 %180
  %183 = vset.pattern.permute.xlu0 1
  %184 = vperm.xlu0 %183, %v36
  %v185 = vpop.permute.xlu0 %184
  %187 = vset.pattern.permute.xlu0 1
  %188 = vperm.xlu0 %187, %v37
  %v189 = vpop.permute.xlu0 %188
  %191 = vset.pattern.permute.xlu0 1
  %192 = vperm.xlu0 %191, %v38
  %v193 = vpop.permute.xlu0 %192
  %v195 = vlaneseq
  %v196 = vshrl.u32 %v195, 7
  %v197 = vsub.s32 5, %v196
  %v198 = vrot.slane %v26, %v197
  %v199 = vmul.f32 %v157, %v198
  %v200 = vmul.f32 %v161, %v198
  %v201 = vmul.f32 %v165, %v198
  %v202 = vmul.f32 %v169, %v198
  %v203 = vmul.f32 %v173, %v198
  %v204 = vmul.f32 %v177, %v198
  %v205 = vmul.f32 %v181, %v198
  %v206 = vmul.f32 %v185, %v198
  %v207 = vmul.f32 %v189, %v198
  %v208 = vmul.f32 %v193, %v198
  %v209 = vadd.f32 %v129, %v199
  %v210 = vadd.f32 %v130, %v200
  %v211 = vadd.f32 %v131, %v201
  %v212 = vadd.f32 %v132, %v202
  %v213 = vadd.f32 %v133, %v203
  %v214 = vadd.f32 %v134, %v204
  %v215 = vadd.f32 %v135, %v205
  %v216 = vadd.f32 %v136, %v206
  %v217 = vadd.f32 %v137, %v207
  %v218 = vadd.f32 %v138, %v208
  %219 = vset.pattern.permute.xlu0 2
  %220 = vperm.xlu0 %219, %v27
  %v221 = vpop.permute.xlu0 %220
  %223 = vset.pattern.permute.xlu0 2
  %224 = vperm.xlu0 %223, %v28
  %v225 = vpop.permute.xlu0 %224
  %v227 = vlaneseq
  %v228 = vshrl.u32 %v227, 7
  %v229 = vsub.s32 2, %v228
  %v230 = vrot.slane %v26, %v229
  %v231 = vmul.f32 %v221, %v230
  %v232 = vmul.f32 %v225, %v230
  %v233 = vadd.f32 %v153, %v231
  %v234 = vadd.f32 %v154, %v232
  %235 = vset.pattern.permute.xlu0 2
  %236 = vperm.xlu0 %235, %v29
  %v237 = vpop.permute.xlu0 %236
  %239 = vset.pattern.permute.xlu0 2
  %240 = vperm.xlu0 %239, %v30
  %v241 = vpop.permute.xlu0 %240
  %243 = vset.pattern.permute.xlu0 2
  %244 = vperm.xlu0 %243, %v31
  %v245 = vpop.permute.xlu0 %244
  %247 = vset.pattern.permute.xlu0 2
  %248 = vperm.xlu0 %247, %v32
  %v249 = vpop.permute.xlu0 %248
  %251 = vset.pattern.permute.xlu0 2
  %252 = vperm.xlu0 %251, %v33
  %v253 = vpop.permute.xlu0 %252
  %255 = vset.pattern.permute.xlu0 2
  %256 = vperm.xlu0 %255, %v34
  %v257 = vpop.permute.xlu0 %256
  %259 = vset.pattern.permute.xlu0 2
  %260 = vperm.xlu0 %259, %v35
  %v261 = vpop.permute.xlu0 %260
  %263 = vset.pattern.permute.xlu0 2
  %264 = vperm.xlu0 %263, %v36
  %v265 = vpop.permute.xlu0 %264
  %267 = vset.pattern.permute.xlu0 2
  %268 = vperm.xlu0 %267, %v37
  %v269 = vpop.permute.xlu0 %268
  %271 = vset.pattern.permute.xlu0 2
  %272 = vperm.xlu0 %271, %v38
  %v273 = vpop.permute.xlu0 %272
  %v275 = vlaneseq
  %v276 = vshrl.u32 %v275, 7
  %v277 = vsub.s32 6, %v276
  %v278 = vrot.slane %v26, %v277
  %v279 = vmul.f32 %v237, %v278
  %v280 = vmul.f32 %v241, %v278
  %v281 = vmul.f32 %v245, %v278
  %v282 = vmul.f32 %v249, %v278
  %v283 = vmul.f32 %v253, %v278
  %v284 = vmul.f32 %v257, %v278
  %v285 = vmul.f32 %v261, %v278
  %v286 = vmul.f32 %v265, %v278
  %v287 = vmul.f32 %v269, %v278
  %v288 = vmul.f32 %v273, %v278
  %v289 = vadd.f32 %v209, %v279
  %v290 = vadd.f32 %v210, %v280
  %v291 = vadd.f32 %v211, %v281
  %v292 = vadd.f32 %v212, %v282
  %v293 = vadd.f32 %v213, %v283
  %v294 = vadd.f32 %v214, %v284
  %v295 = vadd.f32 %v215, %v285
  %v296 = vadd.f32 %v216, %v286
  %v297 = vadd.f32 %v217, %v287
  %v298 = vadd.f32 %v218, %v288
  %vm299 = vcmask 523264
  %300 = vst.msk [vmem:[#allocation2] sm:$0xff] %vm299, %v233
  %301 = vst.msk [vmem:[#allocation2 + $0x8] sm:$0xff] %vm299, %v234
  %302 = vst.msk [vmem:[#allocation2 + $0x10] sm:$0xff] %vm299, %v289
  %303 = vst.msk [vmem:[#allocation2 + $0x18] sm:$0xff] %vm299, %v290
  %304 = vst.msk [vmem:[#allocation2 + $0x20] sm:$0xff] %vm299, %v291
  %305 = vst.msk [vmem:[#allocation2 + $0x28] sm:$0xff] %vm299, %v292
  %306 = vst.msk [vmem:[#allocation2 + $0x30] sm:$0xff] %vm299, %v293
  %307 = vst.msk [vmem:[#allocation2 + $0x38] sm:$0xff] %vm299, %v294
  %308 = vst.msk [vmem:[#allocation2 + $0x40] sm:$0xff] %vm299, %v295
  %309 = vst.msk [vmem:[#allocation2 + $0x48] sm:$0xff] %vm299, %v296
  %310 = vst.msk [vmem:[#allocation2 + $0x50] sm:$0xff] %vm299, %v297
  %311 = vst.msk [vmem:[#allocation2 + $0x58] sm:$0xff] %vm299, %v298
  %s312 = scalar_lea.vmem %s0, 16
  %v313 = vld [vmem:[%s312] sm:$0xff]
  %v314 = vld [vmem:[%s312 + $0x8] sm:$0xff]
  %s315 = scalar_lea.vmem %s1, 80
  %v316 = vld [vmem:[%s315] sm:$0xff]
  %v317 = vld [vmem:[%s315 + $0x8] sm:$0xff]
  %v318 = vld [vmem:[%s315 + $0x10] sm:$0xff]
  %v319 = vld [vmem:[%s315 + $0x18] sm:$0xff]
  %v320 = vld [vmem:[%s315 + $0x20] sm:$0xff]
  %v321 = vld [vmem:[%s315 + $0x28] sm:$0xff]
  %v322 = vld [vmem:[%s315 + $0x30] sm:$0xff]
  %v323 = vld [vmem:[%s315 + $0x38] sm:$0xff]
  %v324 = vld [vmem:[%s315 + $0x40] sm:$0xff]
  %v325 = vld [vmem:[%s315 + $0x48] sm:$0xff]
  %327 = vset.pattern.permute.xlu0 0
  %328 = vperm.xlu0 %327, %v313
  %v329 = vpop.permute.xlu0 %328
  %332 = vset.pattern.permute.xlu0 0
  %333 = vperm.xlu0 %332, %v314
  %v334 = vpop.permute.xlu0 %333
  %v336 = vmul.f32 %v329, %v52
  %v337 = vmul.f32 %v334, %v52
  %v338 = vadd.f32 %v58, %v336
  %v339 = vadd.f32 %v58, %v337
  %341 = vset.pattern.permute.xlu0 0
  %342 = vperm.xlu0 %341, %v316
  %v343 = vpop.permute.xlu0 %342
  %346 = vset.pattern.permute.xlu0 0
  %347 = vperm.xlu0 %346, %v317
  %v348 = vpop.permute.xlu0 %347
  %351 = vset.pattern.permute.xlu0 0
  %352 = vperm.xlu0 %351, %v318
  %v353 = vpop.permute.xlu0 %352
  %356 = vset.pattern.permute.xlu0 0
  %357 = vperm.xlu0 %356, %v319
  %v358 = vpop.permute.xlu0 %357
  %361 = vset.pattern.permute.xlu0 0
  %362 = vperm.xlu0 %361, %v320
  %v363 = vpop.permute.xlu0 %362
  %366 = vset.pattern.permute.xlu0 0
  %367 = vperm.xlu0 %366, %v321
  %v368 = vpop.permute.xlu0 %367
  %371 = vset.pattern.permute.xlu0 0
  %372 = vperm.xlu0 %371, %v322
  %v373 = vpop.permute.xlu0 %372
  %376 = vset.pattern.permute.xlu0 0
  %377 = vperm.xlu0 %376, %v323
  %v378 = vpop.permute.xlu0 %377
  %381 = vset.pattern.permute.xlu0 0
  %382 = vperm.xlu0 %381, %v324
  %v383 = vpop.permute.xlu0 %382
  %386 = vset.pattern.permute.xlu0 0
  %387 = vperm.xlu0 %386, %v325
  %v388 = vpop.permute.xlu0 %387
  %v390 = vmul.f32 %v343, %v114
  %v391 = vmul.f32 %v348, %v114
  %v392 = vmul.f32 %v353, %v114
  %v393 = vmul.f32 %v358, %v114
  %v394 = vmul.f32 %v363, %v114
  %v395 = vmul.f32 %v368, %v114
  %v396 = vmul.f32 %v373, %v114
  %v397 = vmul.f32 %v378, %v114
  %v398 = vmul.f32 %v383, %v114
  %v399 = vmul.f32 %v388, %v114
  %v400 = vadd.f32 %v128, %v390
  %v401 = vadd.f32 %v128, %v391
  %v402 = vadd.f32 %v128, %v392
  %v403 = vadd.f32 %v128, %v393
  %v404 = vadd.f32 %v128, %v394
  %v405 = vadd.f32 %v128, %v395
  %v406 = vadd.f32 %v128, %v396
  %v407 = vadd.f32 %v128, %v397
  %v408 = vadd.f32 %v128, %v398
  %v409 = vadd.f32 %v128, %v399
  %410 = vset.pattern.permute.xlu0 1
  %411 = vperm.xlu0 %410, %v313
  %v412 = vpop.permute.xlu0 %411
  %414 = vset.pattern.permute.xlu0 1
  %415 = vperm.xlu0 %414, %v314
  %v416 = vpop.permute.xlu0 %415
  %v418 = vmul.f32 %v412, %v150
  %v419 = vmul.f32 %v416, %v150
  %v420 = vadd.f32 %v338, %v418
  %v421 = vadd.f32 %v339, %v419
  %422 = vset.pattern.permute.xlu0 1
  %423 = vperm.xlu0 %422, %v316
  %v424 = vpop.permute.xlu0 %423
  %426 = vset.pattern.permute.xlu0 1
  %427 = vperm.xlu0 %426, %v317
  %v428 = vpop.permute.xlu0 %427
  %430 = vset.pattern.permute.xlu0 1
  %431 = vperm.xlu0 %430, %v318
  %v432 = vpop.permute.xlu0 %431
  %434 = vset.pattern.permute.xlu0 1
  %435 = vperm.xlu0 %434, %v319
  %v436 = vpop.permute.xlu0 %435
  %438 = vset.pattern.permute.xlu0 1
  %439 = vperm.xlu0 %438, %v320
  %v440 = vpop.permute.xlu0 %439
  %442 = vset.pattern.permute.xlu0 1
  %443 = vperm.xlu0 %442, %v321
  %v444 = vpop.permute.xlu0 %443
  %446 = vset.pattern.permute.xlu0 1
  %447 = vperm.xlu0 %446, %v322
  %v448 = vpop.permute.xlu0 %447
  %450 = vset.pattern.permute.xlu0 1
  %451 = vperm.xlu0 %450, %v323
  %v452 = vpop.permute.xlu0 %451
  %454 = vset.pattern.permute.xlu0 1
  %455 = vperm.xlu0 %454, %v324
  %v456 = vpop.permute.xlu0 %455
  %458 = vset.pattern.permute.xlu0 1
  %459 = vperm.xlu0 %458, %v325
  %v460 = vpop.permute.xlu0 %459
  %v462 = vmul.f32 %v424, %v198
  %v463 = vmul.f32 %v428, %v198
  %v464 = vmul.f32 %v432, %v198
  %v465 = vmul.f32 %v436, %v198
  %v466 = vmul.f32 %v440, %v198
  %v467 = vmul.f32 %v444, %v198
  %v468 = vmul.f32 %v448, %v198
  %v469 = vmul.f32 %v452, %v198
  %v470 = vmul.f32 %v456, %v198
  %v471 = vmul.f32 %v460, %v198
  %v472 = vadd.f32 %v400, %v462
  %v473 = vadd.f32 %v401, %v463
  %v474 = vadd.f32 %v402, %v464
  %v475 = vadd.f32 %v403, %v465
  %v476 = vadd.f32 %v404, %v466
  %v477 = vadd.f32 %v405, %v467
  %v478 = vadd.f32 %v406, %v468
  %v479 = vadd.f32 %v407, %v469
  %v480 = vadd.f32 %v408, %v470
  %v481 = vadd.f32 %v409, %v471
  %482 = vset.pattern.permute.xlu0 2
  %483 = vperm.xlu0 %482, %v313
  %v484 = vpop.permute.xlu0 %483
  %486 = vset.pattern.permute.xlu0 2
  %487 = vperm.xlu0 %486, %v314
  %v488 = vpop.permute.xlu0 %487
  %v490 = vmul.f32 %v484, %v230
  %v491 = vmul.f32 %v488, %v230
  %v492 = vadd.f32 %v420, %v490
  %v493 = vadd.f32 %v421, %v491
  %494 = vset.pattern.permute.xlu0 2
  %495 = vperm.xlu0 %494, %v316
  %v496 = vpop.permute.xlu0 %495
  %498 = vset.pattern.permute.xlu0 2
  %499 = vperm.xlu0 %498, %v317
  %v500 = vpop.permute.xlu0 %499
  %502 = vset.pattern.permute.xlu0 2
  %503 = vperm.xlu0 %502, %v318
  %v504 = vpop.permute.xlu0 %503
  %506 = vset.pattern.permute.xlu0 2
  %507 = vperm.xlu0 %506, %v319
  %v508 = vpop.permute.xlu0 %507
  %510 = vset.pattern.permute.xlu0 2
  %511 = vperm.xlu0 %510, %v320
  %v512 = vpop.permute.xlu0 %511
  %514 = vset.pattern.permute.xlu0 2
  %515 = vperm.xlu0 %514, %v321
  %v516 = vpop.permute.xlu0 %515
  %518 = vset.pattern.permute.xlu0 2
  %519 = vperm.xlu0 %518, %v322
  %v520 = vpop.permute.xlu0 %519
  %522 = vset.pattern.permute.xlu0 2
  %523 = vperm.xlu0 %522, %v323
  %v524 = vpop.permute.xlu0 %523
  %526 = vset.pattern.permute.xlu0 2
  %527 = vperm.xlu0 %526, %v324
  %v528 = vpop.permute.xlu0 %527
  %530 = vset.pattern.permute.xlu0 2
  %531 = vperm.xlu0 %530, %v325
  %v532 = vpop.permute.xlu0 %531
  %v534 = vmul.f32 %v496, %v278
  %v535 = vmul.f32 %v500, %v278
  %v536 = vmul.f32 %v504, %v278
  %v537 = vmul.f32 %v508, %v278
  %v538 = vmul.f32 %v512, %v278
  %v539 = vmul.f32 %v516, %v278
  %v540 = vmul.f32 %v520, %v278
  %v541 = vmul.f32 %v524, %v278
  %v542 = vmul.f32 %v528, %v278
  %v543 = vmul.f32 %v532, %v278
  %v544 = vadd.f32 %v472, %v534
  %v545 = vadd.f32 %v473, %v535
  %v546 = vadd.f32 %v474, %v536
  %v547 = vadd.f32 %v475, %v537
  %v548 = vadd.f32 %v476, %v538
  %v549 = vadd.f32 %v477, %v539
  %v550 = vadd.f32 %v478, %v540
  %v551 = vadd.f32 %v479, %v541
  %v552 = vadd.f32 %v480, %v542
  %v553 = vadd.f32 %v481, %v543
  %556 = vrot.lane.b32.xlu0 %v492, 64
  %v557 = vpop.permute.xlu0 %556
  %558 = vrot.lane.b32.xlu0 %v493, 64
  %v559 = vpop.permute.xlu0 %558
  %vm562 = vcmask 1048064
  %563 = vst.msk [vmem:[#allocation2] sm:$0xff] %vm562, %v557
  %564 = vst.msk [vmem:[#allocation2 + $0x8] sm:$0xff] %vm562, %v559
  %575 = vrot.lane.b32.xlu0 %v544, 64
  %v576 = vpop.permute.xlu0 %575
  %577 = vrot.lane.b32.xlu0 %v545, 64
  %v578 = vpop.permute.xlu0 %577
  %579 = vrot.lane.b32.xlu0 %v546, 64
  %v580 = vpop.permute.xlu0 %579
  %581 = vrot.lane.b32.xlu0 %v547, 64
  %v582 = vpop.permute.xlu0 %581
  %583 = vrot.lane.b32.xlu0 %v548, 64
  %v584 = vpop.permute.xlu0 %583
  %585 = vrot.lane.b32.xlu0 %v549, 64
  %v586 = vpop.permute.xlu0 %585
  %587 = vrot.lane.b32.xlu0 %v550, 64
  %v588 = vpop.permute.xlu0 %587
  %589 = vrot.lane.b32.xlu0 %v551, 64
  %v590 = vpop.permute.xlu0 %589
  %591 = vrot.lane.b32.xlu0 %v552, 64
  %v592 = vpop.permute.xlu0 %591
  %593 = vrot.lane.b32.xlu0 %v553, 64
  %v594 = vpop.permute.xlu0 %593
  %605 = vst.msk [vmem:[#allocation2 + $0x10] sm:$0xff] %vm562, %v576
  %606 = vst.msk [vmem:[#allocation2 + $0x18] sm:$0xff] %vm562, %v578
  %607 = vst.msk [vmem:[#allocation2 + $0x20] sm:$0xff] %vm562, %v580
  %608 = vst.msk [vmem:[#allocation2 + $0x28] sm:$0xff] %vm562, %v582
  %609 = vst.msk [vmem:[#allocation2 + $0x30] sm:$0xff] %vm562, %v584
  %610 = vst.msk [vmem:[#allocation2 + $0x38] sm:$0xff] %vm562, %v586
  %611 = vst.msk [vmem:[#allocation2 + $0x40] sm:$0xff] %vm562, %v588
  %612 = vst.msk [vmem:[#allocation2 + $0x48] sm:$0xff] %vm562, %v590
  %613 = vst.msk [vmem:[#allocation2 + $0x50] sm:$0xff] %vm562, %v592
  %614 = vst.msk [vmem:[#allocation2 + $0x58] sm:$0xff] %vm562, %v594
  %v615 = vld [vmem:[%s2] sm:$0xff]
  %v616 = vld [vmem:[%s2 + $0x8] sm:$0xff]
  %v617 = vld [vmem:[%s2 + $0x10] sm:$0xff]
  %v618 = vld [vmem:[%s2 + $0x18] sm:$0xff]
  %619 = vst [vmem:[#allocation2 + $0x60] sm:$0xff] %v615
  %620 = vst [vmem:[#allocation2 + $0x68] sm:$0xff] %v616
  %621 = vst [vmem:[#allocation2 + $0x70] sm:$0xff] %v617
  %622 = vst [vmem:[#allocation2 + $0x78] sm:$0xff] %v618
  %v623 = vld [vmem:[%s4] sm:$0xff]
  %v624 = vld [vmem:[%s4 + $0x8] sm:$0xff]
  %v625 = vld [vmem:[%s4 + $0x10] sm:$0xff]
  %v626 = vld [vmem:[%s4 + $0x18] sm:$0xff]
  %v627 = vld [vmem:[%s4 + $0x20] sm:$0xff]
  %v628 = vld [vmem:[%s4 + $0x28] sm:$0xff]
  %v629 = vld [vmem:[%s4 + $0x30] sm:$0xff]
  %v630 = vld [vmem:[%s4 + $0x38] sm:$0xff]
  %v631 = vld [vmem:[%s4 + $0x40] sm:$0xff]
  %v632 = vld [vmem:[%s4 + $0x48] sm:$0xff]
  %v633 = vld [vmem:[%s4 + $0x50] sm:$0xff]
  %v634 = vld [vmem:[%s4 + $0x58] sm:$0xff]
  %v635 = vld [vmem:[#allocation2] sm:$0xff]
  %v636 = vld [vmem:[#allocation2 + $0x8] sm:$0xff]
  %v637 = vld [vmem:[#allocation2 + $0x10] sm:$0xff]
  %v638 = vld [vmem:[#allocation2 + $0x18] sm:$0xff]
  %v639 = vld [vmem:[#allocation2 + $0x20] sm:$0xff]
  %v640 = vld [vmem:[#allocation2 + $0x28] sm:$0xff]
  %v641 = vld [vmem:[#allocation2 + $0x30] sm:$0xff]
  %v642 = vld [vmem:[#allocation2 + $0x38] sm:$0xff]
  %v643 = vld [vmem:[#allocation2 + $0x40] sm:$0xff]
  %v644 = vld [vmem:[#allocation2 + $0x48] sm:$0xff]
  %v645 = vld [vmem:[#allocation2 + $0x50] sm:$0xff]
  %v646 = vld [vmem:[#allocation2 + $0x58] sm:$0xff]
  %v647 = vld [vmem:[#allocation2 + $0x60] sm:$0xff]
  %v648 = vld [vmem:[#allocation2 + $0x68] sm:$0xff]
  %v649 = vld [vmem:[#allocation2 + $0x70] sm:$0xff]
  %v650 = vld [vmem:[#allocation2 + $0x78] sm:$0xff]
  %651 = vmatprep.subr.mxu0 0.0
  %652 = vmatpush1.msra.mxu0 %v635
  %653 = vmatprep.subr.mxu0 0.0
  %654 = vmatpush1.msra.mxu0 %v636
  %655 = vmatprep.subr.mxu0 0.0
  %656 = vmatpush1.msra.mxu0 %v637
  %657 = vmatprep.subr.mxu0 0.0
  %658 = vmatpush1.msra.mxu0 %v638
  %659 = vmatprep.subr.mxu0 0.0
  %660 = vmatpush1.msra.mxu0 %v639
  %661 = vmatprep.subr.mxu0 0.0
  %662 = vmatpush1.msra.mxu0 %v640
  %663 = vmatprep.subr.mxu0 0.0
  %664 = vmatpush1.msra.mxu0 %v641
  %665 = vmatprep.subr.mxu0 0.0
  %666 = vmatpush1.msra.mxu0 %v642
  %667 = vmatprep.subr.mxu0 0.0
  %668 = vmatpush1.msra.mxu0 %v643
  %669 = vmatprep.subr.mxu0 0.0
  %670 = vmatpush1.msra.mxu0 %v644
  %671 = vmatprep.subr.mxu0 0.0
  %672 = vmatpush1.msra.mxu0 %v645
  %673 = vmatprep.subr.mxu0 0.0
  %674 = vmatpush1.msra.mxu0 %v646
  %675 = vmatprep.subr.mxu0 0.0
  %676 = vmatpush1.msra.mxu0 %v647
  %677 = vmatprep.subr.mxu0 0.0
  %678 = vmatpush1.msra.mxu0 %v648
  %679 = vmatprep.subr.mxu0 0.0
  %680 = vmatpush1.msra.mxu0 %v649
  %681 = vmatprep.subr.mxu0 0.0
  %682 = vmatpush1.msra.mxu0 %v650
  %683 = vmatprep.subr.mxu0 0.0
  %684 = vmatpush1.msra.mxu0 0.0
  %685 = vmatprep.subr.mxu0 0.0
  %686 = vmatpush1.msra.mxu0 0.0
  %687 = vmatprep.subr.mxu0 0.0
  %688 = vmatpush1.msra.mxu0 0.0
  %689 = vmatprep.subr.mxu0 0.0
  %690 = vmatpush1.msra.mxu0 0.0
  %691 = vmatprep.subr.mxu0 0.0
  %692 = vmatpush1.msra.mxu0 0.0
  %693 = vmatprep.subr.mxu0 0.0
  %694 = vmatpush1.msra.mxu0 0.0
  %695 = vmatprep.subr.mxu0 0.0
  %696 = vmatpush1.msra.mxu0 0.0
  %697 = vmatprep.subr.mxu0 0.0
  %698 = vmatpush1.msra.mxu0 0.0
  %699 = vmatprep.subr.mxu0 0.0
  %700 = vmatpush1.msra.mxu0 0.0
  %701 = vmatprep.subr.mxu0 0.0
  %702 = vmatpush1.msra.mxu0 0.0
  %703 = vmatprep.subr.mxu0 0.0
  %704 = vmatpush1.msra.mxu0 0.0
  %705 = vmatprep.subr.mxu0 0.0
  %706 = vmatpush1.msra.mxu0 0.0
  %707 = vmatprep.subr.mxu0 0.0
  %708 = vmatpush1.msra.mxu0 0.0
  %709 = vmatprep.subr.mxu0 0.0
  %710 = vmatpush1.msra.mxu0 0.0
  %711 = vmatprep.subr.mxu0 0.0
  %712 = vmatpush1.msra.mxu0 0.0
  %713 = vmatprep.subr.mxu0 0.0
  %714 = vmatpush1.msra.mxu0 0.0
  %715 = vmatprep.mubr.f32.mxu0 0.0
  %716 = vmatmul.mubr.f32.gmra.mrb[0].mxu0 %v623
  %v717 = vpop.f32.mrb[0].mxu0
  %v718 = vadd.f32 0.0, %v717
  %v719 = vpop.f32.mrb[0].mxu0
  %720 = vmatprep.mubr.f32.mxu0 0.0
  %721 = vmatmul.mubr.f32.gmra.mrb[0].mxu0 %v624
  %v722 = vpop.f32.mrb[0].mxu0
  %v723 = vadd.f32 0.0, %v722
  %v724 = vpop.f32.mrb[0].mxu0
  %725 = vmatprep.mubr.f32.mxu0 0.0
  %726 = vmatmul.mubr.f32.gmra.mrb[0].mxu0 %v625
  %v727 = vpop.f32.mrb[0].mxu0
  %v728 = vadd.f32 0.0, %v727
  %v729 = vpop.f32.mrb[0].mxu0
  %730 = vmatprep.mubr.f32.mxu0 0.0
  %731 = vmatmul.mubr.f32.gmra.mrb[0].mxu0 %v626
  %v732 = vpop.f32.mrb[0].mxu0
  %v733 = vadd.f32 0.0, %v732
  %v734 = vpop.f32.mrb[0].mxu0
  %735 = vmatprep.mubr.f32.mxu0 0.0
  %736 = vmatmul.mubr.f32.gmra.mrb[0].mxu0 %v627
  %v737 = vpop.f32.mrb[0].mxu0
  %v738 = vadd.f32 0.0, %v737
  %v739 = vpop.f32.mrb[0].mxu0
  %740 = vmatprep.mubr.f32.mxu0 0.0
  %741 = vmatmul.mubr.f32.gmra.mrb[0].mxu0 %v628
  %v742 = vpop.f32.mrb[0].mxu0
  %v743 = vadd.f32 0.0, %v742
  %v744 = vpop.f32.mrb[0].mxu0
  %745 = vmatprep.mubr.f32.mxu0 0.0
  %746 = vmatmul.mubr.f32.gmra.mrb[0].mxu0 %v629
  %v747 = vpop.f32.mrb[0].mxu0
  %v748 = vadd.f32 0.0, %v747
  %v749 = vpop.f32.mrb[0].mxu0
  %750 = vmatprep.mubr.f32.mxu0 0.0
  %751 = vmatmul.mubr.f32.gmra.mrb[0].mxu0 %v630
  %v752 = vpop.f32.mrb[0].mxu0
  %v753 = vadd.f32 0.0, %v752
  %v754 = vpop.f32.mrb[0].mxu0
  %755 = vmatprep.mubr.f32.mxu0 0.0
  %756 = vmatmul.mubr.f32.gmra.mrb[0].mxu0 %v631
  %v757 = vpop.f32.mrb[0].mxu0
  %v758 = vadd.f32 0.0, %v757
  %v759 = vpop.f32.mrb[0].mxu0
  %760 = vmatprep.mubr.f32.mxu0 0.0
  %761 = vmatmul.mubr.f32.gmra.mrb[0].mxu0 %v632
  %v762 = vpop.f32.mrb[0].mxu0
  %v763 = vadd.f32 0.0, %v762
  %v764 = vpop.f32.mrb[0].mxu0
  %765 = vmatprep.mubr.f32.mxu0 0.0
  %766 = vmatmul.mubr.f32.gmra.mrb[0].mxu0 %v633
  %v767 = vpop.f32.mrb[0].mxu0
  %v768 = vadd.f32 0.0, %v767
  %v769 = vpop.f32.mrb[0].mxu0
  %770 = vmatprep.mubr.f32.mxu0 0.0
  %771 = vmatmul.mubr.f32.gmra.mrb[0].mxu0 %v634
  %v772 = vpop.f32.mrb[0].mxu0
  %v773 = vadd.f32 0.0, %v772
  %v774 = vpop.f32.mrb[0].mxu0
  %775 = vdwg.mxu0
  %v776 = vld [vmem:[%s5] sm:$0xff]
  %v777 = vld [vmem:[%s5 + $0x8] sm:$0xff]
  %v778 = vld [vmem:[%s5 + $0x10] sm:$0xff]
  %v779 = vld [vmem:[%s5 + $0x18] sm:$0xff]
  %v780 = vld [vmem:[%s5 + $0x20] sm:$0xff]
  %v781 = vld [vmem:[%s5 + $0x28] sm:$0xff]
  %v782 = vld [vmem:[%s5 + $0x30] sm:$0xff]
  %v783 = vld [vmem:[%s5 + $0x38] sm:$0xff]
  %v784 = vld [vmem:[%s5 + $0x40] sm:$0xff]
  %v785 = vld [vmem:[%s5 + $0x48] sm:$0xff]
  %v786 = vld [vmem:[%s5 + $0x50] sm:$0xff]
  %v787 = vld [vmem:[%s5 + $0x58] sm:$0xff]
  %v788 = vld [vmem:[%s5 + $0x60] sm:$0xff]
  %v789 = vld [vmem:[%s5 + $0x68] sm:$0xff]
  %v790 = vld [vmem:[%s5 + $0x70] sm:$0xff]
  %v791 = vld [vmem:[%s5 + $0x78] sm:$0xff]
  %v792 = vld [vmem:[%s6] sm:$0xff]
  %v793 = vld [vmem:[%s6 + $0x8] sm:$0xff]
  %v794 = vld [vmem:[%s6 + $0x10] sm:$0xff]
  %v795 = vld [vmem:[%s6 + $0x18] sm:$0xff]
  %v796 = vld [vmem:[%s6 + $0x20] sm:$0xff]
  %v797 = vld [vmem:[%s6 + $0x28] sm:$0xff]
  %v798 = vld [vmem:[%s6 + $0x30] sm:$0xff]
  %v799 = vld [vmem:[%s6 + $0x38] sm:$0xff]
  %v800 = vld [vmem:[%s6 + $0x40] sm:$0xff]
  %v801 = vld [vmem:[%s6 + $0x48] sm:$0xff]
  %v802 = vld [vmem:[%s6 + $0x50] sm:$0xff]
  %v803 = vld [vmem:[%s6 + $0x58] sm:$0xff]
  %804 = vmatprep.subr.mxu0 0.0
  %805 = vmatpush1.msra.mxu0 %v776
  %806 = vmatprep.subr.mxu0 0.0
  %807 = vmatpush1.msra.mxu0 %v777
  %808 = vmatprep.subr.mxu0 0.0
  %809 = vmatpush1.msra.mxu0 %v778
  %810 = vmatprep.subr.mxu0 0.0
  %811 = vmatpush1.msra.mxu0 %v779
  %812 = vmatprep.subr.mxu0 0.0
  %813 = vmatpush1.msra.mxu0 %v780
  %814 = vmatprep.subr.mxu0 0.0
  %815 = vmatpush1.msra.mxu0 %v781
  %816 = vmatprep.subr.mxu0 0.0
  %817 = vmatpush1.msra.mxu0 %v782
  %818 = vmatprep.subr.mxu0 0.0
  %819 = vmatpush1.msra.mxu0 %v783
  %820 = vmatprep.subr.mxu0 0.0
  %821 = vmatpush1.msra.mxu0 %v784
  %822 = vmatprep.subr.mxu0 0.0
  %823 = vmatpush1.msra.mxu0 %v785
  %824 = vmatprep.subr.mxu0 0.0
  %825 = vmatpush1.msra.mxu0 %v786
  %826 = vmatprep.subr.mxu0 0.0
  %827 = vmatpush1.msra.mxu0 %v787
  %828 = vmatprep.subr.mxu0 0.0
  %829 = vmatpush1.msra.mxu0 %v788
  %830 = vmatprep.subr.mxu0 0.0
  %831 = vmatpush1.msra.mxu0 %v789
  %832 = vmatprep.subr.mxu0 0.0
  %833 = vmatpush1.msra.mxu0 %v790
  %834 = vmatprep.subr.mxu0 0.0
  %835 = vmatpush1.msra.mxu0 %v791
  %836 = vmatprep.subr.mxu0 0.0
  %837 = vmatpush1.msra.mxu0 0.0
  %838 = vmatprep.subr.mxu0 0.0
  %839 = vmatpush1.msra.mxu0 0.0
  %840 = vmatprep.subr.mxu0 0.0
  %841 = vmatpush1.msra.mxu0 0.0
  %842 = vmatprep.subr.mxu0 0.0
  %843 = vmatpush1.msra.mxu0 0.0
  %844 = vmatprep.subr.mxu0 0.0
  %845 = vmatpush1.msra.mxu0 0.0
  %846 = vmatprep.subr.mxu0 0.0
  %847 = vmatpush1.msra.mxu0 0.0
  %848 = vmatprep.subr.mxu0 0.0
  %849 = vmatpush1.msra.mxu0 0.0
  %850 = vmatprep.subr.mxu0 0.0
  %851 = vmatpush1.msra.mxu0 0.0
  %852 = vmatprep.subr.mxu0 0.0
  %853 = vmatpush1.msra.mxu0 0.0
  %854 = vmatprep.subr.mxu0 0.0
  %855 = vmatpush1.msra.mxu0 0.0
  %856 = vmatprep.subr.mxu0 0.0
  %857 = vmatpush1.msra.mxu0 0.0
  %858 = vmatprep.subr.mxu0 0.0
  %859 = vmatpush1.msra.mxu0 0.0
  %860 = vmatprep.subr.mxu0 0.0
  %861 = vmatpush1.msra.mxu0 0.0
  %862 = vmatprep.subr.mxu0 0.0
  %863 = vmatpush1.msra.mxu0 0.0
  %864 = vmatprep.subr.mxu0 0.0
  %865 = vmatpush1.msra.mxu0 0.0
  %866 = vmatprep.subr.mxu0 0.0
  %867 = vmatpush1.msra.mxu0 0.0
  %868 = vmatprep.mubr.f32.mxu0 0.0
  %869 = vmatmul.mubr.f32.gmra.mrb[0].mxu0 %v718
  %v870 = vpop.f32.mrb[0].mxu0
  %v871 = vadd.f32 %v792, %v870
  %v872 = vpop.f32.mrb[0].mxu0
  %873 = vmatprep.mubr.f32.mxu0 0.0
  %874 = vmatmul.mubr.f32.gmra.mrb[0].mxu0 %v723
  %v875 = vpop.f32.mrb[0].mxu0
  %v876 = vadd.f32 %v793, %v875
  %v877 = vpop.f32.mrb[0].mxu0
  %878 = vmatprep.mubr.f32.mxu0 0.0
  %879 = vmatmul.mubr.f32.gmra.mrb[0].mxu0 %v728
  %v880 = vpop.f32.mrb[0].mxu0
  %v881 = vadd.f32 %v794, %v880
  %v882 = vpop.f32.mrb[0].mxu0
  %883 = vmatprep.mubr.f32.mxu0 0.0
  %884 = vmatmul.mubr.f32.gmra.mrb[0].mxu0 %v733
  %v885 = vpop.f32.mrb[0].mxu0
  %v886 = vadd.f32 %v795, %v885
  %v887 = vpop.f32.mrb[0].mxu0
  %888 = vmatprep.mubr.f32.mxu0 0.0
  %889 = vmatmul.mubr.f32.gmra.mrb[0].mxu0 %v738
  %v890 = vpop.f32.mrb[0].mxu0
  %v891 = vadd.f32 %v796, %v890
  %v892 = vpop.f32.mrb[0].mxu0
  %893 = vmatprep.mubr.f32.mxu0 0.0
  %894 = vmatmul.mubr.f32.gmra.mrb[0].mxu0 %v743
  %v895 = vpop.f32.mrb[0].mxu0
  %v896 = vadd.f32 %v797, %v895
  %v897 = vpop.f32.mrb[0].mxu0
  %898 = vmatprep.mubr.f32.mxu0 0.0
  %899 = vmatmul.mubr.f32.gmra.mrb[0].mxu0 %v748
  %v900 = vpop.f32.mrb[0].mxu0
  %v901 = vadd.f32 %v798, %v900
  %v902 = vpop.f32.mrb[0].mxu0
  %903 = vmatprep.mubr.f32.mxu0 0.0
  %904 = vmatmul.mubr.f32.gmra.mrb[0].mxu0 %v753
  %v905 = vpop.f32.mrb[0].mxu0
  %v906 = vadd.f32 %v799, %v905
  %v907 = vpop.f32.mrb[0].mxu0
  %908 = vmatprep.mubr.f32.mxu0 0.0
  %909 = vmatmul.mubr.f32.gmra.mrb[0].mxu0 %v758
  %v910 = vpop.f32.mrb[0].mxu0
  %v911 = vadd.f32 %v800, %v910
  %v912 = vpop.f32.mrb[0].mxu0
  %913 = vmatprep.mubr.f32.mxu0 0.0
  %914 = vmatmul.mubr.f32.gmra.mrb[0].mxu0 %v763
  %v915 = vpop.f32.mrb[0].mxu0
  %v916 = vadd.f32 %v801, %v915
  %v917 = vpop.f32.mrb[0].mxu0
  %918 = vmatprep.mubr.f32.mxu0 0.0
  %919 = vmatmul.mubr.f32.gmra.mrb[0].mxu0 %v768
  %v920 = vpop.f32.mrb[0].mxu0
  %v921 = vadd.f32 %v802, %v920
  %v922 = vpop.f32.mrb[0].mxu0
  %923 = vmatprep.mubr.f32.mxu0 0.0
  %924 = vmatmul.mubr.f32.gmra.mrb[0].mxu0 %v773
  %v925 = vpop.f32.mrb[0].mxu0
  %v926 = vadd.f32 %v803, %v925
  %v927 = vpop.f32.mrb[0].mxu0
  %928 = vdwg.mxu0
  %vm929 = vcmask 97280
  %930 = vst.msk [vmem:[%s7] sm:$0xff] %vm929, %v871
  %931 = vst.msk [vmem:[%s7 + $0x8] sm:$0xff] %vm929, %v876
  %932 = vst.msk [vmem:[%s7 + $0x10] sm:$0xff] %vm929, %v881
  %933 = vst.msk [vmem:[%s7 + $0x18] sm:$0xff] %vm929, %v886
  %934 = vst.msk [vmem:[%s7 + $0x20] sm:$0xff] %vm929, %v891
  %935 = vst.msk [vmem:[%s7 + $0x28] sm:$0xff] %vm929, %v896
  %936 = vst.msk [vmem:[%s7 + $0x30] sm:$0xff] %vm929, %v901
  %937 = vst.msk [vmem:[%s7 + $0x38] sm:$0xff] %vm929, %v906
  %938 = vst.msk [vmem:[%s7 + $0x40] sm:$0xff] %vm929, %v911
  %939 = vst.msk [vmem:[%s7 + $0x48] sm:$0xff] %vm929, %v916
  %940 = vst.msk [vmem:[%s7 + $0x50] sm:$0xff] %vm929, %v921
  %941 = vst.msk [vmem:[%s7 + $0x58] sm:$0xff] %vm929, %v926
  %v942 = vld [vmem:[%s0] sm:$0xff]
  %v943 = vld [vmem:[%s0 + $0x8] sm:$0xff]
  %v944 = vadd.f32 %v871, %v942
  %v945 = vadd.f32 %v876, %v943
  %vm946 = vcmask 23552
  %947 = vst.msk [vmem:[%s7] sm:$0xff] %vm946, %v944
  %948 = vst.msk [vmem:[%s7 + $0x8] sm:$0xff] %vm946, %v945
  %v949 = vld [vmem:[%s1] sm:$0xff]
  %v950 = vld [vmem:[%s1 + $0x8] sm:$0xff]
  %v951 = vld [vmem:[%s1 + $0x10] sm:$0xff]
  %v952 = vld [vmem:[%s1 + $0x18] sm:$0xff]
  %v953 = vld [vmem:[%s1 + $0x20] sm:$0xff]
  %v954 = vld [vmem:[%s1 + $0x28] sm:$0xff]
  %v955 = vld [vmem:[%s1 + $0x30] sm:$0xff]
  %v956 = vld [vmem:[%s1 + $0x38] sm:$0xff]
  %v957 = vld [vmem:[%s1 + $0x40] sm:$0xff]
  %v958 = vld [vmem:[%s1 + $0x48] sm:$0xff]
  %969 = vrot.lane.b32.xlu0 %v949, 3
  %v970 = vpop.permute.xlu0 %969
  %971 = vrot.lane.b32.xlu0 %v950, 3
  %v972 = vpop.permute.xlu0 %971
  %973 = vrot.lane.b32.xlu0 %v951, 3
  %v974 = vpop.permute.xlu0 %973
  %975 = vrot.lane.b32.xlu0 %v952, 3
  %v976 = vpop.permute.xlu0 %975
  %977 = vrot.lane.b32.xlu0 %v953, 3
  %v978 = vpop.permute.xlu0 %977
  %979 = vrot.lane.b32.xlu0 %v954, 3
  %v980 = vpop.permute.xlu0 %979
  %981 = vrot.lane.b32.xlu0 %v955, 3
  %v982 = vpop.permute.xlu0 %981
  %983 = vrot.lane.b32.xlu0 %v956, 3
  %v984 = vpop.permute.xlu0 %983
  %985 = vrot.lane.b32.xlu0 %v957, 3
  %v986 = vpop.permute.xlu0 %985
  %987 = vrot.lane.b32.xlu0 %v958, 3
  %v988 = vpop.permute.xlu0 %987
  %v999 = vadd.f32 %v881, %v970
  %v1000 = vadd.f32 %v886, %v972
  %v1001 = vadd.f32 %v891, %v974
  %v1002 = vadd.f32 %v896, %v976
  %v1003 = vadd.f32 %v901, %v978
  %v1004 = vadd.f32 %v906, %v980
  %v1005 = vadd.f32 %v911, %v982
  %v1006 = vadd.f32 %v916, %v984
  %v1007 = vadd.f32 %v921, %v986
  %v1008 = vadd.f32 %v926, %v988
  %vm1009 = vcmask 48152
  %1010 = vst.msk [vmem:[%s7 + $0x10] sm:$0xff] %vm1009, %v999
  %1011 = vst.msk [vmem:[%s7 + $0x18] sm:$0xff] %vm1009, %v1000
  %1012 = vst.msk [vmem:[%s7 + $0x20] sm:$0xff] %vm1009, %v1001
  %1013 = vst.msk [vmem:[%s7 + $0x28] sm:$0xff] %vm1009, %v1002
  %1014 = vst.msk [vmem:[%s7 + $0x30] sm:$0xff] %vm1009, %v1003
  %1015 = vst.msk [vmem:[%s7 + $0x38] sm:$0xff] %vm1009, %v1004
  %1016 = vst.msk [vmem:[%s7 + $0x40] sm:$0xff] %vm1009, %v1005
  %1017 = vst.msk [vmem:[%s7 + $0x48] sm:$0xff] %vm1009, %v1006
  %1018 = vst.msk [vmem:[%s7 + $0x50] sm:$0xff] %vm1009, %v1007
  %1019 = vst.msk [vmem:[%s7 + $0x58] sm:$0xff] %vm1009, %v1008
  %v1020 = vld [vmem:[%s312] sm:$0xff]
  %v1021 = vld [vmem:[%s312 + $0x8] sm:$0xff]
  %1024 = vrot.lane.b32.xlu0 %v1020, 6
  %v1025 = vpop.permute.xlu0 %1024
  %1026 = vrot.lane.b32.xlu0 %v1021, 6
  %v1027 = vpop.permute.xlu0 %1026
  %v1030 = vadd.f32 %v871, %v1025
  %v1031 = vadd.f32 %v876, %v1027
  %vm1032 = vcmask 72752
  %1033 = vst.msk [vmem:[%s7] sm:$0xff] %vm1032, %v1030
  %1034 = vst.msk [vmem:[%s7 + $0x8] sm:$0xff] %vm1032, %v1031
  %v1035 = vld [vmem:[%s315] sm:$0xff]
  %v1036 = vld [vmem:[%s315 + $0x8] sm:$0xff]
  %v1037 = vld [vmem:[%s315 + $0x10] sm:$0xff]
  %v1038 = vld [vmem:[%s315 + $0x18] sm:$0xff]
  %v1039 = vld [vmem:[%s315 + $0x20] sm:$0xff]
  %v1040 = vld [vmem:[%s315 + $0x28] sm:$0xff]
  %v1041 = vld [vmem:[%s315 + $0x30] sm:$0xff]
  %v1042 = vld [vmem:[%s315 + $0x38] sm:$0xff]
  %v1043 = vld [vmem:[%s315 + $0x40] sm:$0xff]
  %v1044 = vld [vmem:[%s315 + $0x48] sm:$0xff]
  %1055 = vrot.lane.b32.xlu0 %v1035, 9
  %v1056 = vpop.permute.xlu0 %1055
  %1057 = vrot.lane.b32.xlu0 %v1036, 9
  %v1058 = vpop.permute.xlu0 %1057
  %1059 = vrot.lane.b32.xlu0 %v1037, 9
  %v1060 = vpop.permute.xlu0 %1059
  %1061 = vrot.lane.b32.xlu0 %v1038, 9
  %v1062 = vpop.permute.xlu0 %1061
  %1063 = vrot.lane.b32.xlu0 %v1039, 9
  %v1064 = vpop.permute.xlu0 %1063
  %1065 = vrot.lane.b32.xlu0 %v1040, 9
  %v1066 = vpop.permute.xlu0 %1065
  %1067 = vrot.lane.b32.xlu0 %v1041, 9
  %v1068 = vpop.permute.xlu0 %1067
  %1069 = vrot.lane.b32.xlu0 %v1042, 9
  %v1070 = vpop.permute.xlu0 %1069
  %1071 = vrot.lane.b32.xlu0 %v1043, 9
  %v1072 = vpop.permute.xlu0 %1071
  %1073 = vrot.lane.b32.xlu0 %v1044, 9
  %v1074 = vpop.permute.xlu0 %1073
  %v1085 = vadd.f32 %v881, %v1056
  %v1086 = vadd.f32 %v886, %v1058
  %v1087 = vadd.f32 %v891, %v1060
  %v1088 = vadd.f32 %v896, %v1062
  %v1089 = vadd.f32 %v901, %v1064
  %v1090 = vadd.f32 %v906, %v1066
  %v1091 = vadd.f32 %v911, %v1068
  %v1092 = vadd.f32 %v916, %v1070
  %v1093 = vadd.f32 %v921, %v1072
  %v1094 = vadd.f32 %v926, %v1074
  %vm1095 = vcmask 97352
  %1096 = vst.msk [vmem:[%s7 + $0x10] sm:$0xff] %vm1095, %v1085
  %1097 = vst.msk [vmem:[%s7 + $0x18] sm:$0xff] %vm1095, %v1086
  %1098 = vst.msk [vmem:[%s7 + $0x20] sm:$0xff] %vm1095, %v1087
  %1099 = vst.msk [vmem:[%s7 + $0x28] sm:$0xff] %vm1095, %v1088
  %1100 = vst.msk [vmem:[%s7 + $0x30] sm:$0xff] %vm1095, %v1089
  %1101 = vst.msk [vmem:[%s7 + $0x38] sm:$0xff] %vm1095, %v1090
  %1102 = vst.msk [vmem:[%s7 + $0x40] sm:$0xff] %vm1095, %v1091
  %1103 = vst.msk [vmem:[%s7 + $0x48] sm:$0xff] %vm1095, %v1092
  %1104 = vst.msk [vmem:[%s7 + $0x50] sm:$0xff] %vm1095, %v1093
  %1105 = vst.msk [vmem:[%s7 + $0x58] sm:$0xff] %vm1095, %v1094
  // Predicated region
  $region30: #{tpu_custom_call.1} parent=0 // pred_check
    _
  $region31: #{tpu_custom_call.1} parent=0 // pred_check_branch
    %1107 = sbr.rel (0) target = $region33
  $region32: #{tpu_custom_call.1} parent=0 // pred_region
    _
  $region33: #{tpu_custom_call.1} parent=0 // pred_fallthru
    _
  // Predicated region
  $region34: #{tpu_custom_call.1} parent=0 // pred_check
    _
  $region35: #{tpu_custom_call.1} parent=0 // pred_check_branch
    %1109 = sbr.rel (0) target = $region37
  $region36: #{tpu_custom_call.1} parent=0 // pred_region
    _
  $region37: #{tpu_custom_call.1} parent=0 // pred_fallthru
    _

</llo_original>
